<compile_context>
chip_gen: v7x
topology: tpu7x:2x2x1
jax: 0.10.0
libtpu: 0.0.40
codegen_flags: <defaults>
</compile_context>

<pallas_src>
import math

import jax
import jax.numpy as jnp
from jax.experimental import pallas as pl
from jax.experimental.pallas import tpu as pltpu


def _round_up(x, m):
    return (x + m - 1) // m * m


# ----------------------------------------------------------------------------
# chip-aware defaults
# ----------------------------------------------------------------------------
def _device_kind():
    try:
        return jax.devices()[0].device_kind.lower()
    except Exception:
        return ""


def _chip_defaults():
    """(default_tm, default_th, is_v7x) picked from each chip's machine balance."""
    kind = _device_kind()
    if "v7" in kind:
        return 512, 256, True      # ~600 flop/byte per TC, 64 MiB VMEM
    if "v6" in kind or "trillium" in kind:
        return 1024, 256, False    # ~640 flop/byte, 128 MiB VMEM
    if "v5e" in kind or "v5 lite" in kind or "v5lite" in kind:
        return 384, 128, False     # ~240 flop/byte -> tm=256..384 already at roofline
    return 512, 256, False


def _physical_vmem_bytes():
    try:
        cap = getattr(pltpu.get_tpu_info(), "vmem_capacity_bytes", None)
        if cap:
            return int(cap)
    except Exception:
        pass
    kind = _device_kind()
    if "v7" in kind:
        return 64 << 20
    if kind:
        return 128 << 20
    return 64 << 20   # unknown: be conservative


def _estimate_vmem_bytes(tm, th, tn, in_f, n_h, out_itemsize, use_scratch):
    bf = 2                                   # bf16 MXU operands
    two_th = 2 * th
    b = 2 * tm * in_f * bf                   # x block (double-buffered)
    b += 2 * in_f * two_th * bf              # fused w1 tile
    b += 2 * th * tn * bf                    # w2 tile
    b += 2 * n_h * two_th * 4                # b1 (resident full block)
    b += 2 * tn * 4                          # b2
    b += 2 * tm * tn * out_itemsize          # output block
    if use_scratch:
        b += tm * tn * 4                     # f32 accumulator scratch
    # in-kernel f32 temporaries (fc1 result, GLU activation, fc2 partial)
    b += tm * two_th * 4 + tm * th * 4 + tm * tn * 4
    return b


# ----------------------------------------------------------------------------
# kernel
# ----------------------------------------------------------------------------
def _make_kernel(n_h, use_out_as_acc):
    def kernel(x_ref, w1_ref, b1_ref, w2_ref, b2_ref, o_ref, *scratch):
        acc_ref = o_ref if use_out_as_acc else scratch[0]
        j = pl.program_id(2)
        th = w2_ref.shape[0]

        x = x_ref[...]
        # fc1: value|gate columns of this hidden tile are adjacent (interleaved
        # host-side), so ONE (tm,in)x(in,2*th) MXU matmul produces both halves.
        y = jnp.dot(x, w1_ref[...], preferred_element_type=jnp.float32)
        y = y + b1_ref[pl.ds(j, 1), :]        # bias resident in VMEM, no per-step DMA
        yv = y[:, :th]
        yg = y[:, th:]
        # sigmoid(z) = 0.5*(tanh(z/2)+1): transcendental goes to the EUP slot.
        act = yv * (0.5 * (jnp.tanh(0.5 * yg) + 1.0))
        partial = jnp.dot(act.astype(w2_ref.dtype), w2_ref[...],
                          preferred_element_type=jnp.float32)

        if n_h == 1:
            o_ref[...] = (partial + b2_ref[...]).astype(o_ref.dtype)
        else:
            @pl.when(j == 0)
            def _():                          # first partial: no zero-init pass
                acc_ref[...] = partial.astype(acc_ref.dtype)

            @pl.when(jnp.logical_and(j > 0, j < n_h - 1))
            def _():
                acc_ref[...] += partial.astype(acc_ref.dtype)

            @pl.when(j == n_h - 1)
            def _():                          # fold last partial + bias + cast into store
                o_ref[...] = (acc_ref[...].astype(jnp.float32) + partial
                              + b2_ref[...]).astype(o_ref.dtype)

    return kernel


# ----------------------------------------------------------------------------
# one-time weight prep (do this at parameter-load time, NOT per call)
# ----------------------------------------------------------------------------
def prepare_gated_mlp_params(w1, b1, w2, b2, *, th, out_pad,
                             compute_dtype=jnp.bfloat16):
    in_f, two_h = w1.shape
    hidden = two_h // 2
    n_h = hidden // th
    out_f = w2.shape[1]

    # Interleave value/gate columns per hidden tile -> one fc1 matmul per tile.
    w1v = w1[:, :hidden].reshape(in_f, n_h, th)
    w1g = w1[:, hidden:].reshape(in_f, n_h, th)
    w1f = jnp.concatenate([w1v, w1g], axis=2).reshape(in_f, 2 * hidden)
    w1f = w1f.astype(compute_dtype)

    b1v = b1[:hidden].reshape(n_h, th)
    b1g = b1[hidden:].reshape(n_h, th)
    b1f = jnp.concatenate([b1v, b1g], axis=1).astype(jnp.float32)   # (n_h, 2*th)

    w2p = w2.astype(compute_dtype)
    b2p = b2.reshape(1, out_f).astype(jnp.float32)
    if out_pad != out_f:
        w2p = jnp.pad(w2p, ((0, 0), (0, out_pad - out_f)))
        b2p = jnp.pad(b2p, ((0, 0), (0, out_pad - out_f)))

    return w1f, b1f, w2p, b2p


# ----------------------------------------------------------------------------
# public API
# ----------------------------------------------------------------------------
def make_parallel_gated_mlp(w1, b1, w2, b2, *, tm=None, th=None, tn=None,
                            compute_dtype=jnp.bfloat16):
    """Prep weights once and return apply(x).  w1:(in,2H) b1:(2H,) w2:(H,out) b2:(out,)."""
    in_f, two_h = w1.shape
    hidden = two_h // 2
    out_f = w2.shape[1]
    assert w2.shape[0] == hidden and b1.shape == (two_h,) and b2.shape == (out_f,)

    default_tm, default_th, is_v7x = _chip_defaults()

    if th is None:
        th = hidden
        for cand in (default_th, 256, 128):
            if cand <= hidden and hidden % cand == 0:
                th = cand
                break
    assert hidden % th == 0, "hidden must be divisible by the hidden tile"
    n_h = hidden // th

    out_pad = _round_up(out_f, 128)          # lane-dense output stores
    w1f, b1f, w2p, b2p = prepare_gated_mlp_params(
        w1, b1, w2, b2, th=th, out_pad=out_pad, compute_dtype=compute_dtype)

    budget = _physical_vmem_bytes() - (8 << 20)
    kernels = {True: _make_kernel(n_h, True), False: _make_kernel(n_h, False)}

    def apply(x):
        orig_dtype = x.dtype
        lead = x.shape[:-1]
        assert x.shape[-1] == in_f
        m = int(math.prod(lead)) if lead else 1

        out_itemsize = jnp.dtype(orig_dtype).itemsize
        use_out_as_acc = jnp.dtype(orig_dtype) == jnp.dtype(jnp.float32)

        # ---- per-call tile selection (cheap host-side Python) ---------------
        _tm = tm if tm is not None else default_tm
        _tm = min(_tm, _round_up(m, 16))
        _tm = _round_up(_tm, 16)             # bf16 min sublane tile is 16
        m_pad = _round_up(m, _tm)
        n_m = m_pad // _tm

        _tn = tn if tn is not None else out_pad
        if tn is None and is_v7x and n_m < 2 and out_pad % 256 == 0:
            _tn = out_pad // 2               # give v7x's second TensorCore work
        assert out_pad % _tn == 0 and _tn % 128 == 0

        # shrink tiles until the pipelined buffers fit this chip's VMEM
        while _estimate_vmem_bytes(_tm, th, _tn, in_f, n_h, out_itemsize,
                                   not use_out_as_acc) > budget:
            if _tm > 256:
                _tm = _round_up(max(256, _tm // 2), 16)
            elif _tn > 128 and _tn % 256 == 0:
                _tn //= 2
            elif _tm > 16:
                _tm = _round_up(max(16, _tm // 2), 16)
            else:
                break
        m_pad = _round_up(m, _tm)
        n_m = m_pad // _tm
        n_o = out_pad // _tn

        est = _estimate_vmem_bytes(_tm, th, _tn, in_f, n_h, out_itemsize,
                                   not use_out_as_acc)
        vmem_limit = int(min(max(int(est * 1.25) + (4 << 20), 32 << 20),
                             budget + (4 << 20)))

        # ---- activation prep -------------------------------------------------
        x2d = x.reshape(m, in_f)
        if x2d.dtype != compute_dtype:
            x2d = x2d.astype(compute_dtype)
        if m_pad != m:
            x2d = jnp.pad(x2d, ((0, m_pad - m), (0, 0)))

        # ---- cost estimate ---------------------------------------------------
        w1_bytes = w1f.size * w1f.dtype.itemsize
        w2_bytes = w2p.size * w2p.dtype.itemsize
        bias_bytes = (b1f.size + b2p.size) * 4
        x_bytes = m_pad * in_f * jnp.dtype(compute_dtype).itemsize
        out_bytes = m_pad * out_pad * out_itemsize
        cost = pl.CostEstimate(
            flops=n_o * 2 * m_pad * in_f * 2 * hidden + 2 * m_pad * hidden * out_pad,
            transcendentals=n_o * m_pad * hidden,
            bytes_accessed=(n_o * x_bytes + n_o * n_m * w1_bytes
                            + n_m * w2_bytes + bias_bytes + out_bytes),
        )

        scratch = [] if use_out_as_acc else [pltpu.VMEM((_tm, _tn), jnp.float32)]

        out2d = pl.pallas_call(
            kernels[use_out_as_acc],
            out_shape=jax.ShapeDtypeStruct((m_pad, out_pad), orig_dtype),
            grid_spec=pltpu.PrefetchScalarGridSpec(
                num_scalar_prefetch=0,
                grid=(n_o, n_m, n_h),
                in_specs=[
                    pl.BlockSpec((_tm, in_f), lambda o, i, j: (i, 0)),      # x
                    pl.BlockSpec((in_f, 2 * th), lambda o, i, j: (0, j)),   # fused w1 tile
                    pl.BlockSpec((n_h, 2 * th), lambda o, i, j: (0, 0)),    # b1 (resident)
                    pl.BlockSpec((th, _tn), lambda o, i, j: (j, o)),        # w2 tile
                    pl.BlockSpec((1, _tn), lambda o, i, j: (0, o)),         # b2
                ],
                out_specs=pl.BlockSpec((_tm, _tn), lambda o, i, j: (i, o)),
                scratch_shapes=scratch,
            ),
            compiler_params=pltpu.CompilerParams(
                dimension_semantics=("parallel", "parallel", "arbitrary"),
                vmem_limit_bytes=vmem_limit),
            cost_estimate=cost,
        )(x2d, w1f, b1f, w2p, b2p)

        out2d = out2d[:m, :out_f]
        return out2d.reshape(*lead, out_f)

    return apply


def parallel_gated_mlp(x, w1, b1, w2, b2, **kwargs):
    """Convenience one-shot wrapper.  For repeated calls, build the closure once
    with make_parallel_gated_mlp so weight prep stays out of the hot path."""
    return make_parallel_gated_mlp(w1, b1, w2, b2, **kwargs)(x)


# ----------------------------------------------------------------------------
# reference & demo
# ----------------------------------------------------------------------------
def _round_hidden(in_features, hidden_features=None, multiple_of=256):
    if hidden_features is None:
        hidden_features = int(8 * in_features / 3)
    return (hidden_features + multiple_of - 1) // multiple_of * multiple_of


def _reference(x, w1, b1, w2, b2, compute_dtype=jnp.bfloat16):
    # Mirrors the kernel's numerics: bf16 MXU operands, f32 accumulation,
    # f32 elementwise GLU.
    h = w1.shape[1] // 2
    xc = x.astype(compute_dtype)
    yv = jnp.einsum("...i,ih->...h", xc, w1[:, :h].astype(compute_dtype),
                    preferred_element_type=jnp.float32) + b1[:h]
    yg = jnp.einsum("...i,ih->...h", xc, w1[:, h:].astype(compute_dtype),
                    preferred_element_type=jnp.float32) + b1[h:]
    act = yv * jax.nn.sigmoid(yg)
    out = jnp.einsum("...h,ho->...o", act.astype(compute_dtype),
                     w2.astype(compute_dtype),
                     preferred_element_type=jnp.float32) + b2
    return out.astype(x.dtype)


if __name__ == "__main__":
    # Small, module-consistent shapes (multiple_of=256 is the module default
    # -> hidden=256 -> two hidden tiles, exercising the reduction axis).
    batch, seq = 2, 8
    in_features = 32
    multiple_of = 256
    hidden = _round_hidden(in_features, None, multiple_of)   # -> 256
    out_features = in_features

    key = jax.random.PRNGKey(0)
    kx, k1, kb1, k2, kb2 = jax.random.split(key, 5)

    x = jax.random.normal(kx, (batch, seq, in_features), dtype=jnp.float32)

    # PyTorch stores Linear weight as (out, in); kernel takes (in, out) == W^T.
    scale1 = 1.0 / math.sqrt(in_features)
    w1 = jax.random.uniform(k1, (in_features, 2 * hidden), jnp.float32,
                            -scale1, scale1)
    b1 = jax.random.uniform(kb1, (2 * hidden,), jnp.float32, -scale1, scale1)
    scale2 = 1.0 / math.sqrt(hidden)
    w2 = jax.random.uniform(k2, (hidden, out_features), jnp.float32,
                            -scale2, scale2)
    b2 = jax.random.uniform(kb2, (out_features,), jnp.float32, -scale2, scale2)

    mlp = make_parallel_gated_mlp(w1, b1, w2, b2)   # one-time weight prep

    # f32 activations: accumulates directly into the resident output block.
    out = jax.block_until_ready(mlp(x))
    ref = _reference(x, w1, b1, w2, b2)
    assert out.shape == (batch, seq, out_features)
    assert out.dtype == x.dtype
    assert jnp.allclose(out, ref, atol=2e-2, rtol=2e-2), "f32 mismatch vs reference"

    # bf16 activations: exercises the f32-scratch accumulator variant.
    xb = x.astype(jnp.bfloat16)
    outb = jax.block_until_ready(mlp(xb))
    refb = _reference(xb, w1, b1, w2, b2)
    assert outb.dtype == jnp.bfloat16
    assert jnp.allclose(outb.astype(jnp.float32), refb.astype(jnp.float32),
                        atol=6e-2, rtol=6e-2), "bf16 mismatch vs reference"

    print("KERNEL_OK")
</pallas_src>

<mosaic_0001>
module attributes {stable_mosaic.version = 11 : i64} {
  func.func @kernel(%arg0: i32, %arg1: i32, %arg2: i32, %arg3: memref<16x32xbf16, #tpu.memory_space<vmem>>, %arg4: memref<32x512xbf16, #tpu.memory_space<vmem>>, %arg5: memref<1x512xf32, #tpu.memory_space<vmem>>, %arg6: memref<256x128xbf16, #tpu.memory_space<vmem>>, %arg7: memref<1x128xf32, #tpu.memory_space<vmem>>, %arg8: memref<16x128xf32, #tpu.memory_space<vmem>>) attributes {dimension_semantics = [#tpu.dimension_semantics<parallel>, #tpu.dimension_semantics<parallel>, #tpu.dimension_semantics<arbitrary>], iteration_bounds = array<i64: 1, 1, 1>, scalar_prefetch = 0 : i64, scratch_operands = 0 : i64, tpu.core_type = #tpu.core_type<tc>, window_params = [{transform_indices = @transform_0, window_bounds = array<i64: 16, 32>}, {transform_indices = @transform_1, window_bounds = array<i64: 32, 512>}, {pipeline_mode = #tpu.pipeline_mode<synchronous>, transform_indices = @transform_2, window_bounds = array<i64: 1, 512>}, {transform_indices = @transform_3, window_bounds = array<i64: 256, 128>}, {transform_indices = @transform_4, window_bounds = array<i64: 1, 128>}, {transform_indices = @transform_5, window_bounds = array<i64: 16, 128>}]} {
    %c0 = arith.constant 0 : index
    %c0_0 = arith.constant 0 : index
    %0 = vector.load %arg3[%c0, %c0_0] : memref<16x32xbf16, #tpu.memory_space<vmem>>, vector<16x32xbf16>
    %c0_1 = arith.constant 0 : index
    %c0_2 = arith.constant 0 : index
    %1 = vector.load %arg4[%c0_1, %c0_2] : memref<32x512xbf16, #tpu.memory_space<vmem>>, vector<32x512xbf16>
    %cst = arith.constant dense<0.000000e+00> : vector<16x512xf32>
    %2 = tpu.matmul %0, %1, %cst {dimension_numbers = #tpu.dot_dimension_numbers<[1], [0], [0], [1], [0, 0, 1, 1], [], []>} : vector<16x32xbf16>, vector<32x512xbf16>, vector<16x512xf32> -> vector<16x512xf32>
    %3 = arith.index_cast %arg2 : i32 to index
    %c0_3 = arith.constant 0 : index
    %4 = vector.load %arg5[%3, %c0_3] : memref<1x512xf32, #tpu.memory_space<vmem>>, vector<1x512xf32>
    %5 = vector.broadcast %4 : vector<1x512xf32> to vector<16x512xf32>
    %6 = arith.addf %2, %5 : vector<16x512xf32>
    %7 = vector.extract_strided_slice %6 {offsets = [0, 0], sizes = [16, 256], strides = [1, 1]} : vector<16x512xf32> to vector<16x256xf32>
    %8 = vector.extract_strided_slice %6 {offsets = [0, 256], sizes = [16, 256], strides = [1, 1]} : vector<16x512xf32> to vector<16x256xf32>
    %cst_4 = arith.constant 5.000000e-01 : f32
    %9 = vector.broadcast %cst_4 : f32 to vector<16x256xf32>
    %10 = arith.mulf %9, %8 : vector<16x256xf32>
    %11 = math.tanh %10 : vector<16x256xf32>
    %cst_5 = arith.constant 1.000000e+00 : f32
    %12 = vector.broadcast %cst_5 : f32 to vector<16x256xf32>
    %13 = arith.addf %11, %12 : vector<16x256xf32>
    %cst_6 = arith.constant 5.000000e-01 : f32
    %14 = vector.broadcast %cst_6 : f32 to vector<16x256xf32>
    %15 = arith.mulf %14, %13 : vector<16x256xf32>
    %16 = arith.mulf %7, %15 : vector<16x256xf32>
    %17 = arith.truncf %16 : vector<16x256xf32> to vector<16x256xbf16>
    %c0_7 = arith.constant 0 : index
    %c0_8 = arith.constant 0 : index
    %18 = vector.load %arg6[%c0_7, %c0_8] : memref<256x128xbf16, #tpu.memory_space<vmem>>, vector<256x128xbf16>
    %cst_9 = arith.constant dense<0.000000e+00> : vector<16x128xf32>
    %19 = tpu.matmul %17, %18, %cst_9 {dimension_numbers = #tpu.dot_dimension_numbers<[1], [0], [0], [1], [0, 0, 1, 1], [], []>} : vector<16x256xbf16>, vector<256x128xbf16>, vector<16x128xf32> -> vector<16x128xf32>
    %c0_10 = arith.constant 0 : index
    %c0_11 = arith.constant 0 : index
    %20 = vector.load %arg7[%c0_10, %c0_11] : memref<1x128xf32, #tpu.memory_space<vmem>>, vector<1x128xf32>
    %21 = vector.broadcast %20 : vector<1x128xf32> to vector<16x128xf32>
    %22 = arith.addf %19, %21 : vector<16x128xf32>
    %c0_12 = arith.constant 0 : index
    %c0_13 = arith.constant 0 : index
    %23 = vector.load %arg8[%c0_12, %c0_13] : memref<16x128xf32, #tpu.memory_space<vmem>>, vector<16x128xf32>
    tpu.vector_store %arg8[%c0_12, %c0_13], %22 {strides = array<i32>} : memref<16x128xf32, #tpu.memory_space<vmem>>, vector<16x128xf32>,
    return
  }
  func.func @transform_0(%arg0: i32, %arg1: i32, %arg2: i32) -> (i32, i32) {
    %c0_i32 = arith.constant 0 : i32
    %c0_i32_0 = arith.constant 0 : i32
    return %arg1, %c0_i32 : i32, i32
  }
  func.func @transform_1(%arg0: i32, %arg1: i32, %arg2: i32) -> (i32, i32) {
    %c0_i32 = arith.constant 0 : i32
    %c0_i32_0 = arith.constant 0 : i32
    return %c0_i32, %arg2 : i32, i32
  }
  func.func @transform_2(%arg0: i32, %arg1: i32, %arg2: i32) -> (i32, i32) {
    %c0_i32 = arith.constant 0 : i32
    %c0_i32_0 = arith.constant 0 : i32
    %c0_i32_1 = arith.constant 0 : i32
    return %c0_i32, %c0_i32_0 : i32, i32
  }
  func.func @transform_3(%arg0: i32, %arg1: i32, %arg2: i32) -> (i32, i32) {
    %c0_i32 = arith.constant 0 : i32
    return %arg2, %arg0 : i32, i32
  }
  func.func @transform_4(%arg0: i32, %arg1: i32, %arg2: i32) -> (i32, i32) {
    %c0_i32 = arith.constant 0 : i32
    %c0_i32_0 = arith.constant 0 : i32
    return %c0_i32, %arg0 : i32, i32
  }
  func.func @transform_5(%arg0: i32, %arg1: i32, %arg2: i32) -> (i32, i32) {
    %c0_i32 = arith.constant 0 : i32
    return %arg1, %arg0 : i32, i32
  }
}

</mosaic_0001>

<llo_original>
// kernel: tpu_custom_call.1
$region0: #{tpu_custom_call.1}
  #allocation0 [shape = 'u32[]', space=smem, size = 0x4, offset = 0x4, fixed_abs, tag = 'smem constant byte address 0x4 - core index']
  #allocation1 [shape = 'u32[144,128]{1,0:T(1,128)}', space=vmem, size = 0x12000, scoped, tag = 'internal scratch']
  %s0 = inlined_call_operand.hbm [shape: bf16[16,32], index: 0, kind: input, shape index: {}]
  %s1 = inlined_call_operand.hbm [shape: bf16[32,512], index: 1, kind: input, shape index: {}]
  %s2 = inlined_call_operand.vmem [shape: f32[1,512], index: 2, kind: input, shape index: {}]
  %s3 = inlined_call_operand.hbm [shape: bf16[256,128], index: 3, kind: input, shape index: {}]
  %s4 = inlined_call_operand.vmem [shape: f32[1,128], index: 4, kind: input, shape index: {}]
  %s5 = inlined_call_operand.hbm [shape: f32[16,128], index: 5, kind: output, shape index: {}]
  %s6 = sld [smem:[#allocation0]]
  $region42: #{tpu_custom_call.1} parent=0
    _
  %s8 = ssub.s32 1, %s6
  %s9 = scalar_select 0, %s8, %s6
  $region1: #{tpu_custom_call.1} parent=0
    #allocation2 [shape = 'u8[4096]{0}', space=vmem, size = 0x1000, scoped, tag = 'input window, operand 0, single buffered']
    #allocation3 [shape = 's32[1]{0}', space=sflag, size = 0x4, scoped, tag = 'scoped memory for tpu_custom_call.1']
    #allocation4 [shape = 's32[1]{0}', space=sflag, size = 0x4, scoped, tag = 'scoped memory for tpu_custom_call.1']
    #allocation5 [shape = 'u8[32768]{0}', space=vmem, size = 0x8000, scoped, tag = 'input window, operand 1, single buffered']
    #allocation6 [shape = 's32[1]{0}', space=sflag, size = 0x4, scoped, tag = 'scoped memory for tpu_custom_call.1']
    #allocation7 [shape = 'u8[65536]{0}', space=vmem, size = 0x10000, scoped, tag = 'input window, operand 3, single buffered']
    #allocation8 [shape = 'u8[8192]{0}', space=vmem, size = 0x2000, scoped, tag = 'output window, operand 0, single buffered']
    %10 = vsyncpa [#allocation3], 0
    %11 = vsyncpa [#allocation6], 0
    %12 = vsyncpa [#allocation4], 0
    // Predicated region
    $region2: #{tpu_custom_call.1} parent=1 // pred_check
      _
    $region3: #{tpu_custom_call.1} parent=1 // pred_check_branch
      %14 = sbr.rel (0) target = $region5
    $region4: #{tpu_custom_call.1} parent=1 // pred_region
      %s16 = ssub.s32 128, 128
      %17 = vsyncadd [#allocation3], %s16
      %s18 = sshll.u32 [#allocation2], 4
      %s19 = int_to_ptr.vmem [resolvable:$true] %s18
      %24 = dma.hbm_to_vmem [thread:$0]  %s0, 128, %s19, [#allocation3], 64, 64, 4
    $region5: #{tpu_custom_call.1} parent=1 // pred_fallthru
      _
    // Predicated region
    $region6: #{tpu_custom_call.1} parent=1 // pred_check
      _
    $region7: #{tpu_custom_call.1} parent=1 // pred_check_branch
      %26 = sbr.rel (0) target = $region9
    $region8: #{tpu_custom_call.1} parent=1 // pred_region
      %s28 = ssub.s32 1024, 1024
      %29 = vsyncadd [#allocation6], %s28
      %s30 = sshll.u32 [#allocation5], 4
      %s31 = int_to_ptr.vmem [resolvable:$true] %s30
      %36 = dma.hbm_to_vmem [thread:$0]  %s1, 1024, %s31, [#allocation6], 256, 256, 16
    $region9: #{tpu_custom_call.1} parent=1 // pred_fallthru
      _
    // Predicated region
    $region10: #{tpu_custom_call.1} parent=1 // pred_check
      _
    $region11: #{tpu_custom_call.1} parent=1 // pred_check_branch
      %38 = sbr.rel (0) target = $region13
    $region12: #{tpu_custom_call.1} parent=1 // pred_region
      _
    $region13: #{tpu_custom_call.1} parent=1 // pred_fallthru
      _
    // Predicated region
    $region14: #{tpu_custom_call.1} parent=1 // pred_check
      _
    $region15: #{tpu_custom_call.1} parent=1 // pred_check_branch
      %40 = sbr.rel (0) target = $region17
    $region16: #{tpu_custom_call.1} parent=1 // pred_region
      %s42 = ssub.s32 2048, 2048
      %43 = vsyncadd [#allocation6], %s42
      %s44 = sshll.u32 [#allocation7], 4
      %s45 = int_to_ptr.vmem [resolvable:$true] %s44
      %50 = dma.hbm_to_vmem [thread:$0]  %s3, 2048, %s45, [#allocation6], 64, 64, 4
    $region17: #{tpu_custom_call.1} parent=1 // pred_fallthru
      _
    // Predicated region
    $region18: #{tpu_custom_call.1} parent=1 // pred_check
      _
    $region19: #{tpu_custom_call.1} parent=1 // pred_check_branch
      %52 = sbr.rel (0) target = $region21
    $region20: #{tpu_custom_call.1} parent=1 // pred_region
      _
    $region21: #{tpu_custom_call.1} parent=1 // pred_fallthru
      _
    // Predicated region
    $region22: #{tpu_custom_call.1} parent=1 // pred_check
      _
    $region23: #{tpu_custom_call.1} parent=1 // pred_check_branch
      %54 = sbr.rel (0) target = $region25
    $region24: #{tpu_custom_call.1} parent=1 // pred_region
      %55 = dma.done [#allocation3], 128
    $region25: #{tpu_custom_call.1} parent=1 // pred_fallthru
      _
    // Predicated region
    $region26: #{tpu_custom_call.1} parent=1 // pred_check
      _
    $region27: #{tpu_custom_call.1} parent=1 // pred_check_branch
      %57 = sbr.rel (0) target = $region29
    $region28: #{tpu_custom_call.1} parent=1 // pred_region
      %58 = dma.done [#allocation6], 1024
    $region29: #{tpu_custom_call.1} parent=1 // pred_fallthru
      _
    // Predicated region
    $region30: #{tpu_custom_call.1} parent=1 // pred_check
      _
    $region31: #{tpu_custom_call.1} parent=1 // pred_check_branch
      %60 = sbr.rel (0) target = $region33
    $region32: #{tpu_custom_call.1} parent=1 // pred_region
      %61 = dma.done [#allocation6], 2048
    $region33: #{tpu_custom_call.1} parent=1 // pred_fallthru
      _
    %v63 = vld [vmem:[#allocation2] sm:$0xf]
    %v64 = vld [vmem:[#allocation2 + $0x4] sm:$0xf]
    %v65 = vld [vmem:[#allocation5] sm:$0xff]
    %v66 = vld [vmem:[#allocation5 + $0x8] sm:$0xff]
    %v67 = vld [vmem:[#allocation5 + $0x10] sm:$0xff]
    %v68 = vld [vmem:[#allocation5 + $0x18] sm:$0xff]
    %v69 = vld [vmem:[#allocation5 + $0x20] sm:$0xff]
    %v70 = vld [vmem:[#allocation5 + $0x28] sm:$0xff]
    %v71 = vld [vmem:[#allocation5 + $0x30] sm:$0xff]
    %v72 = vld [vmem:[#allocation5 + $0x38] sm:$0xff]
    %s73 = smul.u32 0, 4
    %s74 = scalar_lea.vmem %s2, %s73
    %v75 = vld [vmem:[%s74] sm:$0xf]
    %v77 = vlaneseq
    %v78 = vshrl.u32 %v77, 7
    %v79 = vsub.s32 0, %v78
    %v80 = vrot.slane %v75, %v79
    %v81 = vlaneseq
    %v82 = vshrl.u32 %v81, 7
    %v83 = vsub.s32 1, %v82
    %v84 = vrot.slane %v75, %v83
    %v85 = vlaneseq
    %v86 = vshrl.u32 %v85, 7
    %v87 = vsub.s32 2, %v86
    %v88 = vrot.slane %v75, %v87
    %v89 = vlaneseq
    %v90 = vshrl.u32 %v89, 7
    %v91 = vsub.s32 3, %v90
    %v92 = vrot.slane %v75, %v91
    %v99 = vunpack.c.l.b16 %v63
    %v100 = vunpack.c.l.b16 %v64
    %v101 = vpack.c.b16 %v100, %v99
    %v110 = vunpack.c.l.b16 %v65
    %v111 = vunpack.c.h.b16 %v65
    %v112 = vunpack.c.l.b16 %v66
    %v113 = vunpack.c.h.b16 %v66
    %v114 = vunpack.c.l.b16 %v67
    %v115 = vunpack.c.h.b16 %v67
    %v116 = vunpack.c.l.b16 %v68
    %v117 = vunpack.c.h.b16 %v68
    %v118 = vunpack.c.l.b16 %v69
    %v119 = vunpack.c.h.b16 %v69
    %v120 = vunpack.c.l.b16 %v70
    %v121 = vunpack.c.h.b16 %v70
    %v122 = vunpack.c.l.b16 %v71
    %v123 = vunpack.c.h.b16 %v71
    %v124 = vunpack.c.l.b16 %v72
    %v125 = vunpack.c.h.b16 %v72
    %v126 = vpack.c.b16 %v114, %v110
    %v127 = vpack.c.b16 %v115, %v111
    %v128 = vpack.c.b16 %v116, %v112
    %v129 = vpack.c.b16 %v117, %v113
    %v130 = vpack.c.b16 %v122, %v118
    %v131 = vpack.c.b16 %v123, %v119
    %v132 = vpack.c.b16 %v124, %v120
    %v133 = vpack.c.b16 %v125, %v121
    %vm142 = vcmask 261120
    %v144 = vsel %vm142, %v101, 0
    %146 = vmatprep.subr.bf16.mxu0 %v127
    %147 = vmatpush1.bf16.msra.mxu0 %v126
    %148 = vmatprep.subr.bf16.mxu0 %v131
    %149 = vmatpush1.bf16.msra.mxu0 %v130
    %150 = vmatprep.subr.bf16.mxu0 0
    %151 = vmatpush1.bf16.msra.mxu0 0
    %152 = vmatprep.subr.bf16.mxu0 0
    %153 = vmatpush1.bf16.msra.mxu0 0
    %154 = vmatprep.subr.bf16.mxu0 0
    %155 = vmatpush1.bf16.msra.mxu0 0
    %156 = vmatprep.subr.bf16.mxu0 0
    %157 = vmatpush1.bf16.msra.mxu0 0
    %158 = vmatprep.subr.bf16.mxu0 0
    %159 = vmatpush1.bf16.msra.mxu0 0
    %160 = vmatprep.subr.bf16.mxu0 0
    %161 = vmatpush1.bf16.msra.mxu0 0
    %162 = vmatprep.subr.bf16.mxu0 0
    %163 = vmatpush1.bf16.msra.mxu0 0
    %164 = vmatprep.subr.bf16.mxu0 0
    %165 = vmatpush1.bf16.msra.mxu0 0
    %166 = vmatprep.subr.bf16.mxu0 0
    %167 = vmatpush1.bf16.msra.mxu0 0
    %168 = vmatprep.subr.bf16.mxu0 0
    %169 = vmatpush1.bf16.msra.mxu0 0
    %170 = vmatprep.subr.bf16.mxu0 0
    %171 = vmatpush1.bf16.msra.mxu0 0
    %172 = vmatprep.subr.bf16.mxu0 0
    %173 = vmatpush1.bf16.msra.mxu0 0
    %174 = vmatprep.subr.bf16.mxu0 0
    %175 = vmatpush1.bf16.msra.mxu0 0
    %176 = vmatprep.subr.bf16.mxu0 0
    %177 = vmatpush1.bf16.msra.mxu0 0
    %178 = vmatprep.mubr.bf16.mxu0 0
    %179 = vmatmul.mubr.bf16.gmra.mrb[0].mxu0 %v144
    %v180 = vpop.f32.mrb[0].mxu0
    %v181 = vadd.f32 %v80, %v180
    %v182 = vpop.f32.mrb[0].mxu0
    %v183 = vadd.f32 %v84, %v182
    %v184 = vpop.f32.mrb[0].mxu0
    %v185 = vadd.f32 %v80, %v184
    %v186 = vpop.f32.mrb[0].mxu0
    %v187 = vadd.f32 %v84, %v186
    %188 = vdwg.mxu0
    %189 = vmatprep.subr.bf16.mxu0 %v129
    %190 = vmatpush1.bf16.msra.mxu0 %v128
    %191 = vmatprep.subr.bf16.mxu0 %v133
    %192 = vmatpush1.bf16.msra.mxu0 %v132
    %193 = vmatprep.subr.bf16.mxu0 0
    %194 = vmatpush1.bf16.msra.mxu0 0
    %195 = vmatprep.subr.bf16.mxu0 0
    %196 = vmatpush1.bf16.msra.mxu0 0
    %197 = vmatprep.subr.bf16.mxu0 0
    %198 = vmatpush1.bf16.msra.mxu0 0
    %199 = vmatprep.subr.bf16.mxu0 0
    %200 = vmatpush1.bf16.msra.mxu0 0
    %201 = vmatprep.subr.bf16.mxu0 0
    %202 = vmatpush1.bf16.msra.mxu0 0
    %203 = vmatprep.subr.bf16.mxu0 0
    %204 = vmatpush1.bf16.msra.mxu0 0
    %205 = vmatprep.subr.bf16.mxu0 0
    %206 = vmatpush1.bf16.msra.mxu0 0
    %207 = vmatprep.subr.bf16.mxu0 0
    %208 = vmatpush1.bf16.msra.mxu0 0
    %209 = vmatprep.subr.bf16.mxu0 0
    %210 = vmatpush1.bf16.msra.mxu0 0
    %211 = vmatprep.subr.bf16.mxu0 0
    %212 = vmatpush1.bf16.msra.mxu0 0
    %213 = vmatprep.subr.bf16.mxu0 0
    %214 = vmatpush1.bf16.msra.mxu0 0
    %215 = vmatprep.subr.bf16.mxu0 0
    %216 = vmatpush1.bf16.msra.mxu0 0
    %217 = vmatprep.subr.bf16.mxu0 0
    %218 = vmatpush1.bf16.msra.mxu0 0
    %219 = vmatprep.subr.bf16.mxu0 0
    %220 = vmatpush1.bf16.msra.mxu0 0
    %221 = vmatprep.mubr.bf16.mxu0 0
    %222 = vmatmul.mubr.bf16.gmra.mrb[0].mxu0 %v144
    %v223 = vpop.f32.mrb[0].mxu0
    %v224 = vadd.f32 %v88, %v223
    %v225 = vpop.f32.mrb[0].mxu0
    %v226 = vadd.f32 %v92, %v225
    %v227 = vpop.f32.mrb[0].mxu0
    %v228 = vadd.f32 %v88, %v227
    %v229 = vpop.f32.mrb[0].mxu0
    %v230 = vadd.f32 %v92, %v229
    %231 = vdwg.mxu0
    %v232 = vmul.f32 %v224, 0.5
    %v233 = vmul.f32 %v226, 0.5
    %v234 = vmul.f32 %v228, 0.5
    %v235 = vmul.f32 %v230, 0.5
    %v236 = vtanh.pop %v232
    %v237 = vtanh.pop %v233
    %v238 = vtanh.pop %v234
    %v239 = vtanh.pop %v235
    %v240 = vadd.f32 %v236, 1.0
    %v241 = vadd.f32 %v237, 1.0
    %v242 = vadd.f32 %v238, 1.0
    %v243 = vadd.f32 %v239, 1.0
    %v244 = vmul.f32 %v240, 0.5
    %v245 = vmul.f32 %v241, 0.5
    %v246 = vmul.f32 %v242, 0.5
    %v247 = vmul.f32 %v243, 0.5
    %v248 = vmul.f32 %v181, %v244
    %v249 = vmul.f32 %v183, %v245
    %v250 = vmul.f32 %v185, %v246
    %v251 = vmul.f32 %v187, %v247
    %v252 = vpack.c.bf16 %v250, %v248
    %v253 = vpack.c.bf16 %v251, %v249
    %v254 = vld [vmem:[#allocation7] sm:$0xf]
    %v255 = vld [vmem:[#allocation7 + $0x4] sm:$0xf]
    %v256 = vld [vmem:[#allocation7 + $0x8] sm:$0xf]
    %v257 = vld [vmem:[#allocation7 + $0xc] sm:$0xf]
    %v258 = vld [vmem:[#allocation7 + $0x10] sm:$0xf]
    %v259 = vld [vmem:[#allocation7 + $0x14] sm:$0xf]
    %v260 = vld [vmem:[#allocation7 + $0x18] sm:$0xf]
    %v261 = vld [vmem:[#allocation7 + $0x1c] sm:$0xf]
    %v262 = vld [vmem:[#allocation7 + $0x20] sm:$0xf]
    %v263 = vld [vmem:[#allocation7 + $0x24] sm:$0xf]
    %v264 = vld [vmem:[#allocation7 + $0x28] sm:$0xf]
    %v265 = vld [vmem:[#allocation7 + $0x2c] sm:$0xf]
    %v266 = vld [vmem:[#allocation7 + $0x30] sm:$0xf]
    %v267 = vld [vmem:[#allocation7 + $0x34] sm:$0xf]
    %v268 = vld [vmem:[#allocation7 + $0x38] sm:$0xf]
    %v269 = vld [vmem:[#allocation7 + $0x3c] sm:$0xf]
    %v270 = vld [vmem:[#allocation7 + $0x40] sm:$0xf]
    %v271 = vld [vmem:[#allocation7 + $0x44] sm:$0xf]
    %v272 = vld [vmem:[#allocation7 + $0x48] sm:$0xf]
    %v273 = vld [vmem:[#allocation7 + $0x4c] sm:$0xf]
    %v274 = vld [vmem:[#allocation7 + $0x50] sm:$0xf]
    %v275 = vld [vmem:[#allocation7 + $0x54] sm:$0xf]
    %v276 = vld [vmem:[#allocation7 + $0x58] sm:$0xf]
    %v277 = vld [vmem:[#allocation7 + $0x5c] sm:$0xf]
    %v278 = vld [vmem:[#allocation7 + $0x60] sm:$0xf]
    %v279 = vld [vmem:[#allocation7 + $0x64] sm:$0xf]
    %v280 = vld [vmem:[#allocation7 + $0x68] sm:$0xf]
    %v281 = vld [vmem:[#allocation7 + $0x6c] sm:$0xf]
    %v282 = vld [vmem:[#allocation7 + $0x70] sm:$0xf]
    %v283 = vld [vmem:[#allocation7 + $0x74] sm:$0xf]
    %v284 = vld [vmem:[#allocation7 + $0x78] sm:$0xf]
    %v285 = vld [vmem:[#allocation7 + $0x7c] sm:$0xf]
    %v286 = vld [vmem:[%s4] sm:$0x1]
    %v288 = vlaneseq
    %v289 = vshrl.u32 %v288, 7
    %v290 = vsub.s32 0, %v289
    %v291 = vrot.slane %v286, %v290
    %v325 = vunpack.c.l.b16 %v254
    %v326 = vunpack.c.l.b16 %v255
    %v327 = vunpack.c.l.b16 %v256
    %v328 = vunpack.c.l.b16 %v257
    %v329 = vunpack.c.l.b16 %v258
    %v330 = vunpack.c.l.b16 %v259
    %v331 = vunpack.c.l.b16 %v260
    %v332 = vunpack.c.l.b16 %v261
    %v333 = vunpack.c.l.b16 %v262
    %v334 = vunpack.c.l.b16 %v263
    %v335 = vunpack.c.l.b16 %v264
    %v336 = vunpack.c.l.b16 %v265
    %v337 = vunpack.c.l.b16 %v266
    %v338 = vunpack.c.l.b16 %v267
    %v339 = vunpack.c.l.b16 %v268
    %v340 = vunpack.c.l.b16 %v269
    %v341 = vunpack.c.l.b16 %v270
    %v342 = vunpack.c.l.b16 %v271
    %v343 = vunpack.c.l.b16 %v272
    %v344 = vunpack.c.l.b16 %v273
    %v345 = vunpack.c.l.b16 %v274
    %v346 = vunpack.c.l.b16 %v275
    %v347 = vunpack.c.l.b16 %v276
    %v348 = vunpack.c.l.b16 %v277
    %v349 = vunpack.c.l.b16 %v278
    %v350 = vunpack.c.l.b16 %v279
    %v351 = vunpack.c.l.b16 %v280
    %v352 = vunpack.c.l.b16 %v281
    %v353 = vunpack.c.l.b16 %v282
    %v354 = vunpack.c.l.b16 %v283
    %v355 = vunpack.c.l.b16 %v284
    %v356 = vunpack.c.l.b16 %v285
    %v357 = vpack.c.b16 %v326, %v325
    %v358 = vpack.c.b16 %v328, %v327
    %v359 = vpack.c.b16 %v330, %v329
    %v360 = vpack.c.b16 %v332, %v331
    %v361 = vpack.c.b16 %v334, %v333
    %v362 = vpack.c.b16 %v336, %v335
    %v363 = vpack.c.b16 %v338, %v337
    %v364 = vpack.c.b16 %v340, %v339
    %v365 = vpack.c.b16 %v342, %v341
    %v366 = vpack.c.b16 %v344, %v343
    %v367 = vpack.c.b16 %v346, %v345
    %v368 = vpack.c.b16 %v348, %v347
    %v369 = vpack.c.b16 %v350, %v349
    %v370 = vpack.c.b16 %v352, %v351
    %v371 = vpack.c.b16 %v354, %v353
    %v372 = vpack.c.b16 %v356, %v355
    %389 = vmatprep.subr.bf16.mxu0 0
    %390 = vmatpush1.bf16.msra.mxu0 %v357
    %391 = vmatprep.subr.bf16.mxu0 0
    %392 = vmatpush1.bf16.msra.mxu0 %v358
    %393 = vmatprep.subr.bf16.mxu0 0
    %394 = vmatpush1.bf16.msra.mxu0 %v359
    %395 = vmatprep.subr.bf16.mxu0 0
    %396 = vmatpush1.bf16.msra.mxu0 %v360
    %397 = vmatprep.subr.bf16.mxu0 0
    %398 = vmatpush1.bf16.msra.mxu0 %v361
    %399 = vmatprep.subr.bf16.mxu0 0
    %400 = vmatpush1.bf16.msra.mxu0 %v362
    %401 = vmatprep.subr.bf16.mxu0 0
    %402 = vmatpush1.bf16.msra.mxu0 %v363
    %403 = vmatprep.subr.bf16.mxu0 0
    %404 = vmatpush1.bf16.msra.mxu0 %v364
    %405 = vmatprep.subr.bf16.mxu0 0
    %406 = vmatpush1.bf16.msra.mxu0 %v365
    %407 = vmatprep.subr.bf16.mxu0 0
    %408 = vmatpush1.bf16.msra.mxu0 %v366
    %409 = vmatprep.subr.bf16.mxu0 0
    %410 = vmatpush1.bf16.msra.mxu0 %v367
    %411 = vmatprep.subr.bf16.mxu0 0
    %412 = vmatpush1.bf16.msra.mxu0 %v368
    %413 = vmatprep.subr.bf16.mxu0 0
    %414 = vmatpush1.bf16.msra.mxu0 %v369
    %415 = vmatprep.subr.bf16.mxu0 0
    %416 = vmatpush1.bf16.msra.mxu0 %v370
    %417 = vmatprep.subr.bf16.mxu0 0
    %418 = vmatpush1.bf16.msra.mxu0 %v371
    %419 = vmatprep.subr.bf16.mxu0 0
    %420 = vmatpush1.bf16.msra.mxu0 %v372
    %421 = vmatprep.mubr.bf16.mxu0 %v253
    %422 = vmatmul.mubr.bf16.gmra.mrb[0].mxu0 %v252
    %v423 = vpop.f32.mrb[0].mxu0
    %v424 = vadd.f32 %v291, %v423
    %v425 = vpop.f32.mrb[0].mxu0
    %v426 = vpop.f32.mrb[0].mxu0
    %v427 = vadd.f32 %v291, %v426
    %v428 = vpop.f32.mrb[0].mxu0
    %429 = vdwg.mxu0
    %430 = vst [vmem:[#allocation8] sm:$0xff] %v424
    %431 = vst [vmem:[#allocation8 + $0x8] sm:$0xff] %v427
    // Predicated region
    $region34: #{tpu_custom_call.1} parent=1 // pred_check
      _
    $region35: #{tpu_custom_call.1} parent=1 // pred_check_branch
      %433 = sbr.rel (0) target = $region37
    $region36: #{tpu_custom_call.1} parent=1 // pred_region
      %s435 = ssub.s32 256, 256
      %436 = vsyncadd [#allocation4], %s435
      %s437 = sshll.u32 [#allocation8], 4
      %s438 = int_to_ptr.vmem [resolvable:$true] %s437
      %443 = dma.vmem_to_hbm [thread:$0]  %s438, 256, %s5, [#allocation4], 128, 128, 8
    $region37: #{tpu_custom_call.1} parent=1 // pred_fallthru
      _
    // Predicated region
    $region38: #{tpu_custom_call.1} parent=1 // pred_check
      _
    $region39: #{tpu_custom_call.1} parent=1 // pred_check_branch
      %445 = sbr.rel (0) target = $region41
    $region40: #{tpu_custom_call.1} parent=1 // pred_region
      %446 = dma.done [#allocation4], 256
    $region41: #{tpu_custom_call.1} parent=1 // pred_fallthru
      _
    %447 = vsyncpa [#allocation3], 1
    %448 = vsyncpa [#allocation6], 1
    %449 = vsyncpa [#allocation4], 1

</llo_original>
